<compile_context>
chip_gen: v7x
topology: tpu7x:2x2x1
jax: 0.10.0
libtpu: 0.0.40
codegen_flags: <defaults>
</compile_context>

<pallas_src>
import functools

import jax
import jax.numpy as jnp
from jax.experimental import pallas as pl
from jax.experimental.pallas import tpu as pltpu

_LANES = 128


def _lane_shift(x, offset):
    """out[..., j] = x[..., (j + offset) % lanes]. Only non-wrapping lanes are used."""
    return jnp.roll(x, shift=-offset, axis=x.ndim - 1)


def _bbox_kernel(boxes_ref, deltas_ref, out_ref, *, regress_factor):
    # Blocks are (TM, 128); lanes hold 32 boxes interleaved [x1, y1, x2, y2].
    bx = boxes_ref[...]
    dl = deltas_ref[...]

    lane = jax.lax.broadcasted_iota(jnp.int32, bx.shape, dimension=bx.ndim - 1)
    lane4 = lane & 3
    is_lo = (lane & 2) == 0                      # x1 / y1 lanes (lane % 4 in {0, 1})

    # Period-4 regress_factor built in-kernel from scalar constants (no captured arrays).
    rf0, rf1, rf2, rf3 = (float(f) for f in regress_factor)
    rf = jnp.where(
        lane4 == 0, rf0,
        jnp.where(lane4 == 1, rf1, jnp.where(lane4 == 2, rf2, rf3)),
    ).astype(bx.dtype)
    d = dl * rf                                   # dx, dy, dw, dh at their own lanes

    # Partner coordinate of the same box, two lanes away.
    bx_ahead2 = _lane_shift(bx, +2)               # x2/y2 aligned onto x1/y1 lanes
    bx_back2 = _lane_shift(bx, -2)                # x1/y1 aligned onto x2/y2 lanes
    other = jnp.where(is_lo, bx_ahead2, bx_back2)

    wh = jnp.where(is_lo, other - bx, bx - other)     # width (even) / height (odd) lanes
    ctr = jnp.where(is_lo, bx, other) + 0.5 * wh      # ctr_x (even) / ctr_y (odd) lanes

    d_ahead2 = _lane_shift(d, +2)
    d_back2 = _lane_shift(d, -2)
    d_xy = jnp.where(is_lo, d, d_back2)           # dx / dy of own box at every lane
    d_wh = jnp.where(is_lo, d_ahead2, d)          # dw / dh of own box at every lane

    pred_ctr = ctr + d_xy * wh
    pred_wh = jnp.exp(d_wh) * wh

    out = pred_ctr + jnp.where(is_lo, -0.5, 0.5) * pred_wh
    out_ref[...] = out.astype(out_ref.dtype)      # direct lane-dense store, no concat


def _pick_tm(rows, max_block_rows):
    """Largest legal sublane block (multiple of 8), keeping >=2 grid steps when
    the problem is big enough so v7x's two TensorCores both get work."""
    if rows <= 8 or rows % 8 != 0:
        return rows                               # tiny / odd row count: one full block
    tm = min(max_block_rows - max_block_rows % 8, rows)
    if tm == rows and rows >= 16:
        half = rows // 2
        if half % 8 == 0:
            tm = half
    return tm


def bbox_transform(boxes, deltas, regress_factor, *, max_block_rows=2048):
    """boxes, deltas: (B, N, 4) float32; regress_factor: static 4-tuple of floats.
    Returns pred_boxes (B, N, 4)."""
    B, N, C = boxes.shape
    assert C == 4 and deltas.shape == boxes.shape
    dtype = boxes.dtype

    # Rare pad so B*Np*4 is a multiple of 128 (i.e. B*Np % 32 == 0); padded boxes
    # are all-zero -> exp(0)*0 = 0, sliced off afterwards.  No transpose anywhere.
    Np = N
    if (B * N * 4) % _LANES != 0:
        Np = N + ((-N) % 32)
        pad = Np - N
        boxes = jnp.pad(boxes, ((0, 0), (0, pad), (0, 0)))
        deltas = jnp.pad(deltas, ((0, 0), (0, pad), (0, 0)))

    rows = (B * Np * 4) // _LANES
    boxes2d = boxes.reshape(rows, _LANES)         # free contiguous reshape
    deltas2d = deltas.reshape(rows, _LANES)

    tm = _pick_tm(rows, max_block_rows)
    grid = (pl.cdiv(rows, tm),)

    kernel = functools.partial(
        _bbox_kernel, regress_factor=tuple(float(f) for f in regress_factor)
    )

    out2d = pl.pallas_call(
        kernel,
        out_shape=jax.ShapeDtypeStruct((rows, _LANES), dtype),
        grid_spec=pltpu.PrefetchScalarGridSpec(
            num_scalar_prefetch=0,
            grid=grid,
            in_specs=[
                pl.BlockSpec((tm, _LANES), lambda i: (i, 0)),
                pl.BlockSpec((tm, _LANES), lambda i: (i, 0)),
            ],
            out_specs=pl.BlockSpec((tm, _LANES), lambda i: (i, 0)),
        ),
        compiler_params=pltpu.CompilerParams(
            dimension_semantics=("parallel",),
        ),
    )(boxes2d, deltas2d)

    out = out2d.reshape(B, Np, 4)
    if Np != N:
        out = out[:, :N, :]
    return out


def bbox_transform_ref(boxes, deltas, regress_factor):
    """Pure-JAX reference matching the PyTorch forward exactly."""
    widths = boxes[:, :, 2] - boxes[:, :, 0]
    heights = boxes[:, :, 3] - boxes[:, :, 1]
    ctr_x = boxes[:, :, 0] + 0.5 * widths
    ctr_y = boxes[:, :, 1] + 0.5 * heights
    dx = deltas[:, :, 0] * regress_factor[0]
    dy = deltas[:, :, 1] * regress_factor[1]
    dw = deltas[:, :, 2] * regress_factor[2]
    dh = deltas[:, :, 3] * regress_factor[3]
    pred_ctr_x = ctr_x + dx * widths
    pred_ctr_y = ctr_y + dy * heights
    pred_w = jnp.exp(dw) * widths
    pred_h = jnp.exp(dh) * heights
    return jnp.stack(
        [
            pred_ctr_x - 0.5 * pred_w,
            pred_ctr_y - 0.5 * pred_h,
            pred_ctr_x + 0.5 * pred_w,
            pred_ctr_y + 0.5 * pred_h,
        ],
        axis=2,
    )


if __name__ == "__main__":
    key = jax.random.PRNGKey(0)
    k1, k2, k3 = jax.random.split(key, 3)

    B, N = 2, 256
    regress_factor = (0.1, 0.1, 0.2, 0.2)   # static __init__ parameter

    # Valid-ish boxes: x1,y1 in [0,32), x2=x1+w, y2=y1+h with w,h>0.
    xy = jax.random.uniform(k1, (B, N, 2), jnp.float32, 0.0, 32.0)
    wh = jax.random.uniform(k2, (B, N, 2), jnp.float32, 1.0, 16.0)
    boxes = jnp.concatenate([xy, xy + wh], axis=-1)          # (B, N, 4)
    deltas = jax.random.normal(k3, (B, N, 4), jnp.float32)   # (B, N, 4)

    out = bbox_transform(boxes, deltas, regress_factor)
    out = jax.block_until_ready(out)

    ref = bbox_transform_ref(boxes, deltas, regress_factor)
    assert out.shape == (B, N, 4)
    assert jnp.allclose(out, ref, atol=1e-5, rtol=1e-5), "mismatch vs reference"

    print("KERNEL_OK")
</pallas_src>

<mosaic_0001>
module attributes {stable_mosaic.version = 11 : i64} {
  func.func @_bbox_kernel(%arg0: i32, %arg1: memref<8x128xf32, #tpu.memory_space<vmem>>, %arg2: memref<8x128xf32, #tpu.memory_space<vmem>>, %arg3: memref<8x128xf32, #tpu.memory_space<vmem>>) attributes {dimension_semantics = [#tpu.dimension_semantics<parallel>], iteration_bounds = array<i64: 2>, scalar_prefetch = 0 : i64, scratch_operands = 0 : i64, tpu.core_type = #tpu.core_type<tc>, window_params = [{transform_indices = @transform_0, window_bounds = array<i64: 8, 128>}, {transform_indices = @transform_1, window_bounds = array<i64: 8, 128>}, {transform_indices = @transform_2, window_bounds = array<i64: 8, 128>}]} {
    %c0 = arith.constant 0 : index
    %c0_0 = arith.constant 0 : index
    %0 = vector.load %arg1[%c0, %c0_0] : memref<8x128xf32, #tpu.memory_space<vmem>>, vector<8x128xf32>
    %c0_1 = arith.constant 0 : index
    %c0_2 = arith.constant 0 : index
    %1 = vector.load %arg2[%c0_1, %c0_2] : memref<8x128xf32, #tpu.memory_space<vmem>>, vector<8x128xf32>
    %2 = tpu.iota {dimensions = array<i32: 1>} : vector<8x128xi32>
    %c3_i32 = arith.constant 3 : i32
    %3 = vector.broadcast %c3_i32 : i32 to vector<8x128xi32>
    %4 = arith.andi %2, %3 : vector<8x128xi32>
    %c2_i32 = arith.constant 2 : i32
    %5 = vector.broadcast %c2_i32 : i32 to vector<8x128xi32>
    %6 = arith.andi %2, %5 : vector<8x128xi32>
    %c0_i32 = arith.constant 0 : i32
    %7 = vector.broadcast %c0_i32 : i32 to vector<8x128xi32>
    %8 = arith.cmpi eq, %6, %7 : vector<8x128xi32>
    %c0_i32_3 = arith.constant 0 : i32
    %9 = vector.broadcast %c0_i32_3 : i32 to vector<8x128xi32>
    %10 = arith.cmpi eq, %4, %9 : vector<8x128xi32>
    %c1_i32 = arith.constant 1 : i32
    %11 = vector.broadcast %c1_i32 : i32 to vector<8x128xi32>
    %12 = arith.cmpi eq, %4, %11 : vector<8x128xi32>
    %c2_i32_4 = arith.constant 2 : i32
    %13 = vector.broadcast %c2_i32_4 : i32 to vector<8x128xi32>
    %14 = arith.cmpi eq, %4, %13 : vector<8x128xi32>
    %cst = arith.constant 2.000000e-01 : f32
    %cst_5 = arith.constant 2.000000e-01 : f32
    %15 = vector.broadcast %cst : f32 to vector<8x128xf32>
    %16 = vector.broadcast %cst_5 : f32 to vector<8x128xf32>
    %17 = arith.select %14, %15, %16 : vector<8x128xi1>, vector<8x128xf32>
    %cst_6 = arith.constant 1.000000e-01 : f32
    %18 = vector.broadcast %cst_6 : f32 to vector<8x128xf32>
    %19 = arith.select %12, %18, %17 : vector<8x128xi1>, vector<8x128xf32>
    %cst_7 = arith.constant 1.000000e-01 : f32
    %20 = vector.broadcast %cst_7 : f32 to vector<8x128xf32>
    %21 = arith.select %10, %20, %19 : vector<8x128xi1>, vector<8x128xf32>
    %22 = arith.mulf %1, %21 : vector<8x128xf32>
    %23 = vector.extract_strided_slice %0 {offsets = [0, 2], sizes = [8, 126], strides = [1, 1]} : vector<8x128xf32> to vector<8x126xf32>
    %24 = vector.extract_strided_slice %0 {offsets = [0, 0], sizes = [8, 2], strides = [1, 1]} : vector<8x128xf32> to vector<8x2xf32>
    %25 = tpu.concatenate %23, %24 in 1 : vector<8x126xf32>, vector<8x2xf32> -> vector<8x128xf32>
    %26 = vector.extract_strided_slice %0 {offsets = [0, 126], sizes = [8, 2], strides = [1, 1]} : vector<8x128xf32> to vector<8x2xf32>
    %27 = vector.extract_strided_slice %0 {offsets = [0, 0], sizes = [8, 126], strides = [1, 1]} : vector<8x128xf32> to vector<8x126xf32>
    %28 = tpu.concatenate %26, %27 in 1 : vector<8x2xf32>, vector<8x126xf32> -> vector<8x128xf32>
    %29 = arith.select %8, %25, %28 : vector<8x128xi1>, vector<8x128xf32>
    %30 = arith.subf %29, %0 : vector<8x128xf32>
    %31 = arith.subf %0, %29 : vector<8x128xf32>
    %32 = arith.select %8, %30, %31 : vector<8x128xi1>, vector<8x128xf32>
    %33 = arith.select %8, %0, %29 : vector<8x128xi1>, vector<8x128xf32>
    %cst_8 = arith.constant 5.000000e-01 : f32
    %34 = vector.broadcast %cst_8 : f32 to vector<8x128xf32>
    %35 = arith.mulf %34, %32 : vector<8x128xf32>
    %36 = arith.addf %33, %35 : vector<8x128xf32>
    %37 = vector.extract_strided_slice %22 {offsets = [0, 2], sizes = [8, 126], strides = [1, 1]} : vector<8x128xf32> to vector<8x126xf32>
    %38 = vector.extract_strided_slice %22 {offsets = [0, 0], sizes = [8, 2], strides = [1, 1]} : vector<8x128xf32> to vector<8x2xf32>
    %39 = tpu.concatenate %37, %38 in 1 : vector<8x126xf32>, vector<8x2xf32> -> vector<8x128xf32>
    %40 = vector.extract_strided_slice %22 {offsets = [0, 126], sizes = [8, 2], strides = [1, 1]} : vector<8x128xf32> to vector<8x2xf32>
    %41 = vector.extract_strided_slice %22 {offsets = [0, 0], sizes = [8, 126], strides = [1, 1]} : vector<8x128xf32> to vector<8x126xf32>
    %42 = tpu.concatenate %40, %41 in 1 : vector<8x2xf32>, vector<8x126xf32> -> vector<8x128xf32>
    %43 = arith.select %8, %22, %42 : vector<8x128xi1>, vector<8x128xf32>
    %44 = arith.select %8, %39, %22 : vector<8x128xi1>, vector<8x128xf32>
    %45 = arith.mulf %43, %32 : vector<8x128xf32>
    %46 = arith.addf %36, %45 : vector<8x128xf32>
    %47 = math.exp %44 : vector<8x128xf32>
    %48 = arith.mulf %47, %32 : vector<8x128xf32>
    %cst_9 = arith.constant -5.000000e-01 : f32
    %cst_10 = arith.constant 5.000000e-01 : f32
    %49 = vector.broadcast %cst_9 : f32 to vector<8x128xf32>
    %50 = vector.broadcast %cst_10 : f32 to vector<8x128xf32>
    %51 = arith.select %8, %49, %50 : vector<8x128xi1>, vector<8x128xf32>
    %52 = arith.mulf %51, %48 : vector<8x128xf32>
    %53 = arith.addf %46, %52 : vector<8x128xf32>
    %c0_11 = arith.constant 0 : index
    %c0_12 = arith.constant 0 : index
    %54 = vector.load %arg3[%c0_11, %c0_12] : memref<8x128xf32, #tpu.memory_space<vmem>>, vector<8x128xf32>
    tpu.vector_store %arg3[%c0_11, %c0_12], %53 {strides = array<i32>} : memref<8x128xf32, #tpu.memory_space<vmem>>, vector<8x128xf32>,
    return
  }
  func.func @transform_0(%arg0: i32) -> (i32, i32) {
    %c0_i32 = arith.constant 0 : i32
    %c0_i32_0 = arith.constant 0 : i32
    return %arg0, %c0_i32 : i32, i32
  }
  func.func @transform_1(%arg0: i32) -> (i32, i32) {
    %c0_i32 = arith.constant 0 : i32
    %c0_i32_0 = arith.constant 0 : i32
    return %arg0, %c0_i32 : i32, i32
  }
  func.func @transform_2(%arg0: i32) -> (i32, i32) {
    %c0_i32 = arith.constant 0 : i32
    %c0_i32_0 = arith.constant 0 : i32
    return %arg0, %c0_i32 : i32, i32
  }
}

</mosaic_0001>

<llo_original>
// kernel: tpu_custom_call.1
$region0: #{tpu_custom_call.1}
  #allocation0 [shape = 'u32[]', space=smem, size = 0x4, offset = 0x4, fixed_abs, tag = 'smem constant byte address 0x4 - core index']
  #allocation1 [shape = 'u32[144,128]{1,0:T(1,128)}', space=vmem, size = 0x12000, scoped, tag = 'internal scratch']
  %s0 = inlined_call_operand.hbm [shape: f32[16,128], index: 0, kind: input, shape index: {}]
  %s1 = inlined_call_operand.hbm [shape: f32[16,128], index: 1, kind: input, shape index: {}]
  %s2 = inlined_call_operand.hbm [shape: f32[16,128], index: 2, kind: output, shape index: {}]
  %s3 = sld [smem:[#allocation0]]
  $region49: #{tpu_custom_call.1} parent=0
    _
  %s5 = ssub.s32 1, %s3
  %s6 = scalar_select 0, %s5, %s3
  $region1: #{tpu_custom_call.1} parent=0
    #allocation2 [shape = 'u8[8192]{0}', space=vmem, size = 0x2000, scoped, tag = 'input window, operand 0']
    #allocation3 [shape = 's32[2]{0}', space=sflag, size = 0x8, scoped, tag = 'scoped memory for tpu_custom_call.1']
    #allocation4 [shape = 's32[2]{0}', space=sflag, size = 0x8, scoped, tag = 'scoped memory for tpu_custom_call.1']
    #allocation5 [shape = 'u8[8192]{0}', space=vmem, size = 0x2000, scoped, tag = 'input window, operand 1']
    #allocation6 [shape = 's32[2]{0}', space=sflag, size = 0x8, scoped, tag = 'scoped memory for tpu_custom_call.1']
    #allocation7 [shape = 'u8[8192]{0}', space=vmem, size = 0x2000, scoped, tag = 'output window, operand 0']
    %7 = vsyncpa [#allocation3], 0
    %s8 = scalar_lea.sflag [#allocation3], 1
    %9 = vsyncpa %s8, 0
    %10 = vsyncpa [#allocation6], 0
    %s11 = scalar_lea.sflag [#allocation6], 1
    %12 = vsyncpa %s11, 0
    %13 = vsyncpa [#allocation4], 0
    %s14 = scalar_lea.sflag [#allocation4], 1
    %15 = vsyncpa %s14, 0
    loop: start=0, step=1, limit=4
    $region2: #{tpu_custom_call.1} parent=1 // loop_pre_header
      _
    $region3: #{tpu_custom_call.1} parent=1 // loop_header
      %s17 = sphi 0, %s21
      %p18 = scmp.ge.s32.totalorder %s17, 4
      %s27 = sphi 0, %s29
      %s30 = sphi 0, %s27
      %s31 = sphi 0, %s30
      %s47 = sphi 0, %s31
      %s53 = sphi 0, %s55
      %s56 = sphi 0, %s53
      %s57 = sphi 0, %s56
      %s73 = sphi 0, %s57
      %s79 = sphi 0, %s81
      %s82 = sphi 0, %s79
      %s83 = sphi 0, %s82
      %s99 = sphi 0, %s83
    $region4: #{tpu_custom_call.1} parent=1 // loop_header_branch
      %20 = sbr.rel (%p18) target = $region8
    $region5: #{tpu_custom_call.1} parent=1 // loop_body
      %s22 = ssub.s32 %s17, 1
      %s23 = ssub.s32 %s17, 2
      %s24 = sadd.s32 %s17, 1
      %s25 = ssub.s32 %s17, %s24
      %p26 = scmp.eq.s32.totalorder %s25, 0
      %s28 = sadd.s32 %s27, 1
      %s29 = scalar_select %p26, %s27, %s28
      %p32 = pneg %p26
      %p33 = scmp.eq.s32.totalorder %s17, 1
      %p34 = por %p32, %p33
      %p35 = scmp.ne.s32.totalorder %s27, %s30
      %p36 = scmp.eq.s32.totalorder %s17, 0
      %p37 = por %p35, %p36
      %p38 = scmp.ne.s32.totalorder %s27, %s30
      %p39 = scmp.eq.s32.totalorder %s22, 1
      %p40 = por %p38, %p39
      %p41 = scmp.ne.s32.totalorder %s30, %s31
      %p42 = scmp.eq.s32.totalorder %s22, 0
      %p43 = por %p41, %p42
      %p44 = scmp.ne.s32.totalorder %s30, %s31
      %p45 = scmp.eq.s32.totalorder %s23, 1
      %p46 = por %p44, %p45
      %p48 = scmp.ne.s32.totalorder %s31, %s47
      %p49 = scmp.eq.s32.totalorder %s23, 0
      %p50 = por %p48, %p49
      %s51 = ssub.s32 %s17, %s24
      %p52 = scmp.eq.s32.totalorder %s51, 0
      %s54 = sadd.s32 %s53, 1
      %s55 = scalar_select %p52, %s53, %s54
      %p58 = pneg %p52
      %p59 = scmp.eq.s32.totalorder %s17, 1
      %p60 = por %p58, %p59
      %p61 = scmp.ne.s32.totalorder %s53, %s56
      %p62 = scmp.eq.s32.totalorder %s17, 0
      %p63 = por %p61, %p62
      %p64 = scmp.ne.s32.totalorder %s53, %s56
      %p65 = scmp.eq.s32.totalorder %s22, 1
      %p66 = por %p64, %p65
      %p67 = scmp.ne.s32.totalorder %s56, %s57
      %p68 = scmp.eq.s32.totalorder %s22, 0
      %p69 = por %p67, %p68
      %p70 = scmp.ne.s32.totalorder %s56, %s57
      %p71 = scmp.eq.s32.totalorder %s23, 1
      %p72 = por %p70, %p71
      %p74 = scmp.ne.s32.totalorder %s57, %s73
      %p75 = scmp.eq.s32.totalorder %s23, 0
      %p76 = por %p74, %p75
      %s77 = ssub.s32 %s17, %s24
      %p78 = scmp.eq.s32.totalorder %s77, 0
      %s80 = sadd.s32 %s79, 1
      %s81 = scalar_select %p78, %s79, %s80
      %p84 = pneg %p78
      %p85 = scmp.eq.s32.totalorder %s17, 1
      %p86 = por %p84, %p85
      %p87 = scmp.ne.s32.totalorder %s79, %s82
      %p88 = scmp.eq.s32.totalorder %s17, 0
      %p89 = por %p87, %p88
      %p90 = scmp.ne.s32.totalorder %s79, %s82
      %p91 = scmp.eq.s32.totalorder %s22, 1
      %p92 = por %p90, %p91
      %p93 = scmp.ne.s32.totalorder %s82, %s83
      %p94 = scmp.eq.s32.totalorder %s22, 0
      %p95 = por %p93, %p94
      %p96 = scmp.ne.s32.totalorder %s82, %s83
      %p97 = scmp.eq.s32.totalorder %s23, 1
      %p98 = por %p96, %p97
      %p100 = scmp.ne.s32.totalorder %s83, %s99
      %p101 = scmp.eq.s32.totalorder %s23, 0
      %p102 = por %p100, %p101
      %p103 = scmp.le.s32.totalorder 1, %s17
      %p104 = scmp.lt.s32.totalorder %s17, 3
      %p105 = pnand %p103, %p104
      %p106 = pneg %p105
      // Predicated region
      $region9: #{tpu_custom_call.1} parent=5 // pred_check
        _
      $region10: #{tpu_custom_call.1} parent=5 // pred_check_branch
        %108 = sbr.rel (%p105) target = $region12
      $region11: #{tpu_custom_call.1} parent=5 // pred_region
        %s109 = ssub.s32 %s17, 1
      $region12: #{tpu_custom_call.1} parent=5 // pred_fallthru
        _
      %p110 = scmp.lt.s32.totalorder %s17, 2
      // Predicated region
      $region13: #{tpu_custom_call.1} parent=5 // pred_check
        %p111 = pneg %p110
      $region14: #{tpu_custom_call.1} parent=5 // pred_check_branch
        %113 = sbr.rel (%p111) target = $region16
      $region15: #{tpu_custom_call.1} parent=5 // pred_region
        // Predicated region
        $region17: #{tpu_custom_call.1} parent=15 // pred_check
          %p114 = pneg %p37
        $region18: #{tpu_custom_call.1} parent=15 // pred_check_branch
          %116 = sbr.rel (%p114) target = $region20
        $region19: #{tpu_custom_call.1} parent=15 // pred_region
          %s117 = sand.u32 %s27, 1
          %s118 = scalar_lea.sflag [#allocation3], %s117
          %s119 = sand.u32 %s27, 1
          %s120 = smul.addr %s119, 8
          %s121 = scalar_lea.vmem [#allocation2], %s120
          %s123 = ssub.s32 128, 128
          %124 = vsyncadd %s118, %s123
          %s125 = smul.addr %s17, 128
          %s126 = scalar_lea.hbm %s0, %s125
          %s128 = sshll.u32 %s121, 4
          %s129 = int_to_ptr.vmem [resolvable:$true] %s128
          %131 = dma.hbm_to_vmem [thread:$0]  %s126, 128, %s129, %s118
        $region20: #{tpu_custom_call.1} parent=15 // pred_fallthru
          _
        // Predicated region
        $region21: #{tpu_custom_call.1} parent=15 // pred_check
          %p132 = pneg %p63
        $region22: #{tpu_custom_call.1} parent=15 // pred_check_branch
          %134 = sbr.rel (%p132) target = $region24
        $region23: #{tpu_custom_call.1} parent=15 // pred_region
          %s135 = sand.u32 %s53, 1
          %s136 = scalar_lea.sflag [#allocation6], %s135
          %s137 = sand.u32 %s53, 1
          %s138 = smul.addr %s137, 8
          %s139 = scalar_lea.vmem [#allocation5], %s138
          %s141 = ssub.s32 128, 128
          %142 = vsyncadd %s136, %s141
          %s143 = smul.addr %s17, 128
          %s144 = scalar_lea.hbm %s1, %s143
          %s146 = sshll.u32 %s139, 4
          %s147 = int_to_ptr.vmem [resolvable:$true] %s146
          %149 = dma.hbm_to_vmem [thread:$0]  %s144, 128, %s147, %s136
        $region24: #{tpu_custom_call.1} parent=15 // pred_fallthru
          _
      $region16: #{tpu_custom_call.1} parent=5 // pred_fallthru
        _
      %p150 = scmp.le.s32.totalorder 1, %s17
      %p151 = scmp.lt.s32.totalorder %s17, 3
      %p152 = pnand %p150, %p151
      %p153 = pneg %p152
      // Predicated region
      $region25: #{tpu_custom_call.1} parent=5 // pred_check
        _
      $region26: #{tpu_custom_call.1} parent=5 // pred_check_branch
        %155 = sbr.rel (%p152) target = $region28
      $region27: #{tpu_custom_call.1} parent=5 // pred_region
        %s156 = ssub.s32 %s17, 1
        %s157 = sand.u32 %s30, 1
        %s158 = scalar_lea.sflag [#allocation3], %s157
        %s159 = sand.u32 %s30, 1
        %s160 = smul.addr %s159, 8
        %s161 = scalar_lea.vmem [#allocation2], %s160
        // Predicated region
        $region29: #{tpu_custom_call.1} parent=27 // pred_check
          %p162 = pneg %p43
        $region30: #{tpu_custom_call.1} parent=27 // pred_check_branch
          %164 = sbr.rel (%p162) target = $region32
        $region31: #{tpu_custom_call.1} parent=27 // pred_region
          %165 = dma.done %s158, 128
        $region32: #{tpu_custom_call.1} parent=27 // pred_fallthru
          _
        %s166 = sand.u32 %s56, 1
        %s167 = scalar_lea.sflag [#allocation6], %s166
        %s168 = sand.u32 %s56, 1
        %s169 = smul.addr %s168, 8
        %s170 = scalar_lea.vmem [#allocation5], %s169
        // Predicated region
        $region33: #{tpu_custom_call.1} parent=27 // pred_check
          %p171 = pneg %p69
        $region34: #{tpu_custom_call.1} parent=27 // pred_check_branch
          %173 = sbr.rel (%p171) target = $region36
        $region35: #{tpu_custom_call.1} parent=27 // pred_region
          %174 = dma.done %s167, 128
        $region36: #{tpu_custom_call.1} parent=27 // pred_fallthru
          _
        %s175 = sand.u32 %s30, 1
        %s176 = scalar_lea.sflag [#allocation3], %s175
        %s177 = sand.u32 %s30, 1
        %s178 = smul.addr %s177, 8
        %s179 = scalar_lea.vmem [#allocation2], %s178
        %p180 = pneg %p43
        %p181 = pneg %p40
        %s182 = sand.u32 %s56, 1
        %s183 = scalar_lea.sflag [#allocation6], %s182
        %s184 = sand.u32 %s56, 1
        %s185 = smul.addr %s184, 8
        %s186 = scalar_lea.vmem [#allocation5], %s185
        %p187 = pneg %p69
        %p188 = pneg %p66
        %p189 = pneg %p95
        %p190 = pneg %p92
        %s191 = sand.u32 %s82, 1
        %s192 = scalar_lea.sflag [#allocation4], %s191
        %s193 = sand.u32 %s82, 1
        %s194 = smul.addr %s193, 8
        %s195 = scalar_lea.vmem [#allocation7], %s194
        %v196 = vld [vmem:[%s161] sm:$0xff]
        %v197 = vld [vmem:[%s170] sm:$0xff]
        %v198 = vlaneseq
        %v199 = vand.u32 %v198, 127
        %v200 = vand.u32 %v199, 3
        %v201 = vand.u32 %v199, 2
        %vm202 = vcmp.eq.s32.totalorder %v201, 0
        %vm203 = vcmp.eq.s32.totalorder %v200, 0
        %vm204 = vcmp.eq.s32.totalorder %v200, 1
        %v205 = vsel %vm204, 0.1, 0.2
        %v206 = vsel %vm203, 0.1, %v205
        %v207 = vmul.f32 %v197, %v206
        %209 = vrot.lane.b32.xlu0 %v196, 126
        %v210 = vpop.permute.xlu0 %209
        %212 = vrot.lane.b32.xlu0 %v196, 2
        %v213 = vpop.permute.xlu0 %212
        %v215 = vsel %vm202, %v210, %v213
        %v216 = vsub.f32 %v215, %v196
        %v217 = vsub.f32 %v196, %v215
        %v218 = vsel %vm202, %v216, %v217
        %v219 = vsel %vm202, %v196, %v213
        %v220 = vmul.f32 %v218, 0.5
        %v221 = vadd.f32 %v219, %v220
        %223 = vrot.lane.b32.xlu0 %v207, 126
        %v224 = vpop.permute.xlu0 %223
        %226 = vrot.lane.b32.xlu0 %v207, 2
        %v227 = vpop.permute.xlu0 %226
        %v229 = vsel %vm202, %v207, %v227
        %v230 = vsel %vm202, %v224, %v207
        %v231 = vmul.f32 %v229, %v218
        %v232 = vadd.f32 %v221, %v231
        %v233 = vmul.f32 %v230, 1.442695
        %v234 = vpow.pop %v233
        %v235 = vmul.f32 %v234, %v218
        %v236 = vsel %vm202, -0.5, 0.5
        %v237 = vmul.f32 %v236, %v235
        %v238 = vadd.f32 %v232, %v237
        %239 = vst [vmem:[%s195] sm:$0xff] %v238
        %s240 = sand.u32 %s82, 1
        %s241 = scalar_lea.sflag [#allocation4], %s240
        %s242 = sand.u32 %s82, 1
        %s243 = smul.addr %s242, 8
        %s244 = scalar_lea.vmem [#allocation7], %s243
        // Predicated region
        $region37: #{tpu_custom_call.1} parent=27 // pred_check
          %p245 = pneg %p92
        $region38: #{tpu_custom_call.1} parent=27 // pred_check_branch
          %247 = sbr.rel (%p245) target = $region40
        $region39: #{tpu_custom_call.1} parent=27 // pred_region
          %s249 = ssub.s32 128, 128
          %250 = vsyncadd %s241, %s249
          %s251 = smul.addr %s22, 128
          %s252 = scalar_lea.hbm %s2, %s251
          %s254 = sshll.u32 %s244, 4
          %s255 = int_to_ptr.vmem [resolvable:$true] %s254
          %257 = dma.vmem_to_hbm [thread:$0]  %s255, 128, %s252, %s241
        $region40: #{tpu_custom_call.1} parent=27 // pred_fallthru
          _
      $region28: #{tpu_custom_call.1} parent=5 // pred_fallthru
        _
      %p258 = scmp.le.s32.totalorder 2, %s17
      // Predicated region
      $region41: #{tpu_custom_call.1} parent=5 // pred_check
        %p259 = pneg %p258
      $region42: #{tpu_custom_call.1} parent=5 // pred_check_branch
        %261 = sbr.rel (%p259) target = $region44
      $region43: #{tpu_custom_call.1} parent=5 // pred_region
        %s262 = ssub.s32 %s17, 2
        // Predicated region
        $region45: #{tpu_custom_call.1} parent=43 // pred_check
          %p263 = pneg %p98
        $region46: #{tpu_custom_call.1} parent=43 // pred_check_branch
          %265 = sbr.rel (%p263) target = $region48
        $region47: #{tpu_custom_call.1} parent=43 // pred_region
          %s266 = sand.u32 %s83, 1
          %s267 = scalar_lea.sflag [#allocation4], %s266
          %s268 = sand.u32 %s83, 1
          %s269 = smul.addr %s268, 8
          %s270 = scalar_lea.vmem [#allocation7], %s269
          %271 = dma.done %s267, 128
        $region48: #{tpu_custom_call.1} parent=43 // pred_fallthru
          _
      $region44: #{tpu_custom_call.1} parent=5 // pred_fallthru
        _
    $region6: #{tpu_custom_call.1} parent=1 // loop_footer
      %s21 = sadd.s32 1, %s17
    $region7: #{tpu_custom_call.1} parent=1 // loop_footer_branch
      %16 = sbr.rel target = $region3
    $region8: #{tpu_custom_call.1} parent=1 // loop_exit
      _
    %272 = vsyncpa [#allocation3], 1
    %s273 = scalar_lea.sflag [#allocation3], 1
    %274 = vsyncpa %s273, 1
    %275 = vsyncpa [#allocation6], 1
    %s276 = scalar_lea.sflag [#allocation6], 1
    %277 = vsyncpa %s276, 1
    %278 = vsyncpa [#allocation4], 1
    %s279 = scalar_lea.sflag [#allocation4], 1
    %280 = vsyncpa %s279, 1

</llo_original>
